<compile_context>
chip_gen: v7x
topology: tpu7x:2x2x1
jax: 0.10.0
libtpu: 0.0.40
codegen_flags: <defaults>
</compile_context>

<pallas_src>
import functools

import jax
import jax.numpy as jnp
from jax import lax
from jax.experimental import pallas as pl
from jax.experimental.pallas import tpu as pltpu

EPS = 1e-5  # PyTorch BatchNorm2d default eps


def _round_up(v, m):
    return (v + m - 1) // m * m


def _vmem_budget_and_limit():
    """Generation-aware VMEM numbers: (tile-picker budget, vmem_limit_bytes)."""
    cap = 64 * 1024 * 1024  # conservative fallback (v7x-sized) if the query fails
    try:
        cap = int(getattr(pltpu.get_tpu_info(), "vmem_capacity_bytes", cap))
    except Exception:
        pass
    if cap <= 64 * 1024 * 1024:                 # v7x-class: 64 MiB per TensorCore
        return 40 * 1024 * 1024, 48 * 1024 * 1024
    return 56 * 1024 * 1024, 80 * 1024 * 1024   # v5e / v6e: 128 MiB parts


def _pick_hw_tile(HW, N, Cin, Cb, x_bytes, y_bytes, w_bytes, budget_bytes,
                  min_steps=8):
    """Largest lane tile (multiple of 128 dividing HW, or HW itself) that fits the
    double-buffered VMEM budget while keeping >= min_steps total grid steps.
    Falls back to maximizing grid depth when min_steps is unreachable."""
    cin_s = _round_up(Cin, 8)
    cb_s = _round_up(Cb, 8)
    per_lane = 2 * (cin_s * x_bytes + cb_s * y_bytes)      # 2x-buffered x + y tile
    fixed = 2 * (cb_s * _round_up(Cin, 128) * w_bytes      # resident w1
                 + 2 * cin_s * 128 * 4                     # scale1 / bias1
                 + cb_s * 128 * 4)                         # BN2 partial block
    cands = [t for t in range(128, HW + 1, 128) if HW % t == 0]
    if HW not in cands:
        cands.append(HW)            # full-extent block is always layout-legal
    fitting = [t for t in cands if fixed + t * per_lane <= budget_bytes]
    if not fitting:
        fitting = [min(cands)]
    deep = [t for t in fitting if N * (HW // t) >= min_steps]
    if deep:
        return max(deep)
    return min(fitting)


# ---------------------------------------------------------------------------
# Kernel A: BN1 + ReLU + 1x1 conv (channel-major); emits BN2 partial sums.
# ---------------------------------------------------------------------------
def _kernel_a(x_ref, s1_ref, b1_ref, w1_ref, y_ref, st_ref, *, matmul_dtype):
    # x_ref : (1, Cin, T) f32            s1/b1 : (Cin, 1) f32
    # w1_ref: (Cb, Cin) matmul_dtype (pre-cast, VMEM-resident)
    # y_ref : (1, Cb, T) matmul_dtype    st_ref: (1, 1, Cb, 2) f32
    x = x_ref[0]
    h = jnp.maximum(x * s1_ref[...] + b1_ref[...], 0.0)            # BN1 + ReLU
    y = jnp.dot(w1_ref[...], h.astype(matmul_dtype),
                preferred_element_type=jnp.float32)                # (Cb, T) 1x1 conv
    y_ref[0] = y.astype(y_ref.dtype)
    # BN2 batch-stat partials from the f32 accumulator (reduced in the wrapper).
    st_ref[0, 0, :, 0:1] = jnp.sum(y, axis=1, keepdims=True)
    st_ref[0, 0, :, 1:2] = jnp.sum(y * y, axis=1, keepdims=True)


# ---------------------------------------------------------------------------
# Kernel B: BN2 + ReLU + 3x3 conv (padding=1) per image, channel-major.
# ---------------------------------------------------------------------------
def _kernel_b(y_ref, s2_ref, b2_ref, w2_ref, o_ref, *, matmul_dtype, H, W):
    # y_ref : (1, Cb, H*W)          s2/b2 : (Cb, 1) f32
    # w2_ref: (9, K, Cb) matmul_dtype, tap index = dh*3 + dw
    # o_ref : (1, K, H*W) f32 (lane-dense, already NCHW-flat)
    HW = H * W
    K = o_ref.shape[1]

    # BN2 + ReLU fused; cast once to the MXU operand dtype.
    z = jnp.maximum(y_ref[0].astype(jnp.float32) * s2_ref[...] + b2_ref[...],
                    0.0).astype(matmul_dtype)                      # (Cb, HW)

    # Validity masks along the flattened lane axis (zero padding at the borders).
    hw_idx = lax.broadcasted_iota(jnp.int32, (1, HW), 1)
    if (W & (W - 1)) == 0:
        w_idx = jnp.bitwise_and(hw_idx, W - 1)     # cheap path for power-of-two W
    else:
        w_idx = hw_idx % W
    row_ok = [hw_idx >= W, None, hw_idx < HW - W]          # dh = 0, 1, 2
    col_ok = [w_idx >= 1, None, w_idx < W - 1]              # dw = 0, 1, 2

    acc = jnp.zeros((K, HW), jnp.float32)
    for dh in range(3):
        for dw in range(3):
            off = (dh - 1) * W + (dw - 1)
            shifted = z if off == 0 else pltpu.roll(z, (-off) % HW, 1)  # XLU shift
            if row_ok[dh] is not None and col_ok[dw] is not None:
                m = row_ok[dh] & col_ok[dw]
            elif row_ok[dh] is not None:
                m = row_ok[dh]
            else:
                m = col_ok[dw]
            tap = shifted if m is None else jnp.where(m, shifted,
                                                      jnp.zeros_like(shifted))
            acc = acc + jnp.dot(w2_ref[dh * 3 + dw], tap,
                                preferred_element_type=jnp.float32)
    o_ref[0] = acc.astype(o_ref.dtype)


def dense_layer_forward(x_nchw, params, *, matmul_dtype=jnp.bfloat16):
    """Forward of DenseLayer(num_input_features, growth_rate, bn_size, drop_rate=0)."""
    g1, b1, w1, g2, b2, w2 = (params["gamma1"], params["beta1"], params["w1"],
                              params["gamma2"], params["beta2"], params["w2"])
    N, Cin, H, W = x_nchw.shape
    Cb = w1.shape[0]            # bn_size * growth_rate   (w1: (Cb, Cin, 1, 1) OIHW)
    K = w2.shape[0]             # growth_rate             (w2: (K, Cb, 3, 3)  OIHW)
    HW = H * W
    M = N * HW
    f32 = jnp.float32
    y_dtype = matmul_dtype      # y is written once / read once -> store it narrow

    x_cm = x_nchw.astype(f32).reshape(N, Cin, HW)       # channel-major, free reshape

    # ---- BN1 batch statistics: single pass over x in its native layout ----
    s1 = jnp.sum(x_nchw, axis=(0, 2, 3), dtype=f32)
    ss1 = jnp.sum(jnp.square(x_nchw.astype(f32)), axis=(0, 2, 3))
    mean1 = s1 / M
    var1 = jnp.maximum(ss1 / M - mean1 * mean1, 0.0)
    scale1 = (g1 * lax.rsqrt(var1 + EPS)).astype(f32)
    bias1 = (b1 - mean1 * scale1).astype(f32)

    # Pre-cast weights to the MXU operand dtype (no per-step casts in-kernel).
    w1_cm = w1.reshape(Cb, Cin).astype(matmul_dtype)                       # (Cb, Cin)
    w2_k = jnp.transpose(w2, (2, 3, 0, 1)).reshape(9, K, Cb).astype(matmul_dtype)

    budget, vmem_limit = _vmem_budget_and_limit()
    isz = lambda dt: jnp.dtype(dt).itemsize
    hw_tile = _pick_hw_tile(HW, N, Cin, Cb, 4, isz(y_dtype), isz(matmul_dtype),
                            budget)
    n_hw = HW // hw_tile

    # ---- Kernel A: BN1 + ReLU + 1x1 conv, grid over (image, lane tile) ----
    y_cm, part = pl.pallas_call(
        functools.partial(_kernel_a, matmul_dtype=matmul_dtype),
        grid=(N, n_hw),
        in_specs=[
            pl.BlockSpec((1, Cin, hw_tile), lambda n, t: (n, 0, t)),
            pl.BlockSpec((Cin, 1), lambda n, t: (0, 0)),
            pl.BlockSpec((Cin, 1), lambda n, t: (0, 0)),
            pl.BlockSpec((Cb, Cin), lambda n, t: (0, 0)),
        ],
        out_specs=(
            pl.BlockSpec((1, Cb, hw_tile), lambda n, t: (n, 0, t)),
            pl.BlockSpec((1, 1, Cb, 2), lambda n, t: (n, t, 0, 0)),
        ),
        out_shape=(
            jax.ShapeDtypeStruct((N, Cb, HW), y_dtype),
            jax.ShapeDtypeStruct((N, n_hw, Cb, 2), f32),
        ),
        compiler_params=pltpu.CompilerParams(
            dimension_semantics=("parallel", "parallel"),
            vmem_limit_bytes=vmem_limit),
    )(x_cm, scale1.reshape(Cin, 1), bias1.reshape(Cin, 1), w1_cm)

    # ---- BN2 statistics from the per-tile partials (tiny (Cb, 2) reduction) ----
    tot = jnp.sum(part, axis=(0, 1))                    # (Cb, 2)
    mean2 = tot[:, 0] / M
    var2 = jnp.maximum(tot[:, 1] / M - mean2 * mean2, 0.0)
    scale2 = (g2 * lax.rsqrt(var2 + EPS)).astype(f32)
    bias2 = (b2 - mean2 * scale2).astype(f32)

    # ---- Kernel B: BN2 + ReLU + 3x3 conv (9 rolled MXU dots), per-image grid ----
    out_flat = pl.pallas_call(
        functools.partial(_kernel_b, matmul_dtype=matmul_dtype, H=H, W=W),
        grid=(N,),
        in_specs=[
            pl.BlockSpec((1, Cb, HW), lambda n: (n, 0, 0)),
            pl.BlockSpec((Cb, 1), lambda n: (0, 0)),
            pl.BlockSpec((Cb, 1), lambda n: (0, 0)),
            pl.BlockSpec((9, K, Cb), lambda n: (0, 0, 0)),
        ],
        out_specs=pl.BlockSpec((1, K, HW), lambda n: (n, 0, 0)),
        out_shape=jax.ShapeDtypeStruct((N, K, HW), f32),
        compiler_params=pltpu.CompilerParams(
            dimension_semantics=("parallel",),
            vmem_limit_bytes=vmem_limit),
    )(y_cm, scale2.reshape(Cb, 1), bias2.reshape(Cb, 1), w2_k)

    # (N, K, H*W) is already channel-major -> free reshape to NCHW.
    return out_flat.reshape(N, K, H, W)


def reference_forward(x, params):
    """Pure-JAX reference (training-mode BN, same semantics as the PyTorch module)."""
    def bn(t, g, b):
        mean = jnp.mean(t, axis=(0, 2, 3), keepdims=True)
        var = jnp.mean((t - mean) ** 2, axis=(0, 2, 3), keepdims=True)
        return ((t - mean) * lax.rsqrt(var + EPS) * g.reshape(1, -1, 1, 1)
                + b.reshape(1, -1, 1, 1))

    dn = ("NCHW", "OIHW", "NCHW")
    h = jnp.maximum(bn(x, params["gamma1"], params["beta1"]), 0.0)
    y = lax.conv_general_dilated(h, params["w1"], (1, 1), "VALID",
                                 dimension_numbers=dn)
    h2 = jnp.maximum(bn(y, params["gamma2"], params["beta2"]), 0.0)
    return lax.conv_general_dilated(h2, params["w2"], (1, 1), [(1, 1), (1, 1)],
                                    dimension_numbers=dn)


if __name__ == "__main__":
    # DenseLayer hyperparameters (small, consistent with the module).
    num_input_features, growth_rate, bn_size, drop_rate = 8, 8, 4, 0.0
    N, H, W = 8, 16, 16                 # HW = 256 -> Kernel A grid 8, Kernel B grid 8
    Cb = bn_size * growth_rate          # 32
    K = growth_rate                     # 8

    key = jax.random.PRNGKey(0)
    kx, k1, k2, kg1, kb1, kg2, kb2 = jax.random.split(key, 7)

    x = jax.random.normal(kx, (N, num_input_features, H, W), jnp.float32)
    params = {
        "gamma1": 1.0 + 0.1 * jax.random.normal(kg1, (num_input_features,), jnp.float32),
        "beta1": 0.1 * jax.random.normal(kb1, (num_input_features,), jnp.float32),
        "w1": 0.1 * jax.random.normal(k1, (Cb, num_input_features, 1, 1), jnp.float32),
        "gamma2": 1.0 + 0.1 * jax.random.normal(kg2, (Cb,), jnp.float32),
        "beta2": 0.1 * jax.random.normal(kb2, (Cb,), jnp.float32),
        "w2": 0.1 * jax.random.normal(k2, (K, Cb, 3, 3), jnp.float32),
    }

    ref = jax.block_until_ready(reference_forward(x, params))

    # f32 MXU operands: exact-semantics check against the reference.
    out = jax.block_until_ready(
        dense_layer_forward(x, params, matmul_dtype=jnp.float32))
    assert out.shape == (N, K, H, W), out.shape
    assert jnp.allclose(out, ref, rtol=1e-3, atol=1e-3), (
        float(jnp.max(jnp.abs(out - ref))))

    # bf16 MXU operands + bf16 y intermediate (default fast path): loose check.
    out_bf16 = jax.block_until_ready(
        dense_layer_forward(x, params, matmul_dtype=jnp.bfloat16))
    rel = float(jnp.linalg.norm(out_bf16 - ref) / jnp.linalg.norm(ref))
    assert rel < 3e-2, rel

    print("KERNEL_OK")
</pallas_src>

<mosaic_0001>
module attributes {stable_mosaic.version = 11 : i64} {
  func.func @_kernel_a(%arg0: i32, %arg1: i32, %arg2: memref<1x8x256xf32, #tpu.memory_space<vmem>>, %arg3: memref<8x1xf32, #tpu.memory_space<vmem>>, %arg4: memref<8x1xf32, #tpu.memory_space<vmem>>, %arg5: memref<32x8xf32, #tpu.memory_space<vmem>>, %arg6: memref<1x32x256xf32, #tpu.memory_space<vmem>>, %arg7: memref<1x1x32x2xf32, #tpu.memory_space<vmem>>) attributes {dimension_semantics = [#tpu.dimension_semantics<parallel>, #tpu.dimension_semantics<parallel>], iteration_bounds = array<i64: 8, 1>, scalar_prefetch = 0 : i64, scratch_operands = 0 : i64, tpu.core_type = #tpu.core_type<tc>, window_params = [{transform_indices = @transform_0, window_bounds = array<i64: 1, 8, 256>}, {pipeline_mode = #tpu.pipeline_mode<synchronous>, transform_indices = @transform_1, window_bounds = array<i64: 8, 1>}, {pipeline_mode = #tpu.pipeline_mode<synchronous>, transform_indices = @transform_2, window_bounds = array<i64: 8, 1>}, {pipeline_mode = #tpu.pipeline_mode<synchronous>, transform_indices = @transform_3, window_bounds = array<i64: 32, 8>}, {transform_indices = @transform_4, window_bounds = array<i64: 1, 32, 256>}, {transform_indices = @transform_5, window_bounds = array<i64: 1, 1, 32, 2>}]} {
    %c0 = arith.constant 0 : index
    %c0_0 = arith.constant 0 : index
    %c0_1 = arith.constant 0 : index
    %0 = vector.load %arg2[%c0, %c0_0, %c0_1] : memref<1x8x256xf32, #tpu.memory_space<vmem>>, vector<1x8x256xf32>
    %1 = vector.shape_cast %0 : vector<1x8x256xf32> to vector<8x256xf32>
    %c0_2 = arith.constant 0 : index
    %c0_3 = arith.constant 0 : index
    %2 = vector.load %arg3[%c0_2, %c0_3] : memref<8x1xf32, #tpu.memory_space<vmem>>, vector<8x1xf32>
    %3 = vector.broadcast %2 : vector<8x1xf32> to vector<8x256xf32>
    %4 = arith.mulf %1, %3 : vector<8x256xf32>
    %c0_4 = arith.constant 0 : index
    %c0_5 = arith.constant 0 : index
    %5 = vector.load %arg4[%c0_4, %c0_5] : memref<8x1xf32, #tpu.memory_space<vmem>>, vector<8x1xf32>
    %6 = vector.broadcast %5 : vector<8x1xf32> to vector<8x256xf32>
    %7 = arith.addf %4, %6 : vector<8x256xf32>
    %cst = arith.constant 0.000000e+00 : f32
    %8 = vector.broadcast %cst : f32 to vector<8x256xf32>
    %9 = arith.maximumf %7, %8 : vector<8x256xf32>
    %c0_6 = arith.constant 0 : index
    %c0_7 = arith.constant 0 : index
    %10 = vector.load %arg5[%c0_6, %c0_7] : memref<32x8xf32, #tpu.memory_space<vmem>>, vector<32x8xf32>
    %cst_8 = arith.constant dense<0.000000e+00> : vector<32x256xf32>
    %11 = tpu.matmul %10, %9, %cst_8 {dimension_numbers = #tpu.dot_dimension_numbers<[1], [0], [0], [1], [0, 0, 1, 1], [], []>} : vector<32x8xf32>, vector<8x256xf32>, vector<32x256xf32> -> vector<32x256xf32>
    %c0_9 = arith.constant 0 : index
    %c0_10 = arith.constant 0 : index
    %c0_11 = arith.constant 0 : index
    %12 = vector.load %arg6[%c0_9, %c0_10, %c0_11] : memref<1x32x256xf32, #tpu.memory_space<vmem>>, vector<1x32x256xf32>
    %13 = vector.shape_cast %12 : vector<1x32x256xf32> to vector<32x256xf32>
    %14 = vector.shape_cast %11 : vector<32x256xf32> to vector<1x32x256xf32>
    tpu.vector_store %arg6[%c0_9, %c0_10, %c0_11], %14 {strides = array<i32>} : memref<1x32x256xf32, #tpu.memory_space<vmem>>, vector<1x32x256xf32>,
    %cst_12 = arith.constant dense<0.000000e+00> : vector<32xf32>
    %15 = vector.multi_reduction <add>, %11, %cst_12 [1] : vector<32x256xf32> to vector<32xf32>
    %16 = vector.shape_cast %15 : vector<32xf32> to vector<32x1xf32>
    %c0_13 = arith.constant 0 : index
    %c0_14 = arith.constant 0 : index
    %c0_15 = arith.constant 0 : index
    %c0_16 = arith.constant 0 : index
    %17 = vector.load %arg7[%c0_13, %c0_14, %c0_15, %c0_16] : memref<1x1x32x2xf32, #tpu.memory_space<vmem>>, vector<1x1x32x1xf32>
    %18 = vector.shape_cast %17 : vector<1x1x32x1xf32> to vector<32x1xf32>
    %19 = vector.shape_cast %16 : vector<32x1xf32> to vector<1x1x32x1xf32>
    tpu.vector_store %arg7[%c0_13, %c0_14, %c0_15, %c0_16], %19 {strides = array<i32>} : memref<1x1x32x2xf32, #tpu.memory_space<vmem>>, vector<1x1x32x1xf32>,
    %20 = arith.mulf %11, %11 : vector<32x256xf32>
    %cst_17 = arith.constant dense<0.000000e+00> : vector<32xf32>
    %21 = vector.multi_reduction <add>, %20, %cst_17 [1] : vector<32x256xf32> to vector<32xf32>
    %22 = vector.shape_cast %21 : vector<32xf32> to vector<32x1xf32>
    %c0_18 = arith.constant 0 : index
    %c0_19 = arith.constant 0 : index
    %c0_20 = arith.constant 0 : index
    %c1 = arith.constant 1 : index
    %23 = vector.load %arg7[%c0_18, %c0_19, %c0_20, %c1] : memref<1x1x32x2xf32, #tpu.memory_space<vmem>>, vector<1x1x32x1xf32>
    %24 = vector.shape_cast %23 : vector<1x1x32x1xf32> to vector<32x1xf32>
    %25 = vector.shape_cast %22 : vector<32x1xf32> to vector<1x1x32x1xf32>
    tpu.vector_store %arg7[%c0_18, %c0_19, %c0_20, %c1], %25 {strides = array<i32>} : memref<1x1x32x2xf32, #tpu.memory_space<vmem>>, vector<1x1x32x1xf32>,
    return
  }
  func.func @transform_0(%arg0: i32, %arg1: i32) -> (i32, i32, i32) {
    %c0_i32 = arith.constant 0 : i32
    %c0_i32_0 = arith.constant 0 : i32
    return %arg0, %c0_i32, %arg1 : i32, i32, i32
  }
  func.func @transform_1(%arg0: i32, %arg1: i32) -> (i32, i32) {
    %c0_i32 = arith.constant 0 : i32
    %c0_i32_0 = arith.constant 0 : i32
    %c0_i32_1 = arith.constant 0 : i32
    return %c0_i32, %c0_i32_0 : i32, i32
  }
  func.func @transform_2(%arg0: i32, %arg1: i32) -> (i32, i32) {
    %c0_i32 = arith.constant 0 : i32
    %c0_i32_0 = arith.constant 0 : i32
    %c0_i32_1 = arith.constant 0 : i32
    return %c0_i32, %c0_i32_0 : i32, i32
  }
  func.func @transform_3(%arg0: i32, %arg1: i32) -> (i32, i32) {
    %c0_i32 = arith.constant 0 : i32
    %c0_i32_0 = arith.constant 0 : i32
    %c0_i32_1 = arith.constant 0 : i32
    return %c0_i32, %c0_i32_0 : i32, i32
  }
  func.func @transform_4(%arg0: i32, %arg1: i32) -> (i32, i32, i32) {
    %c0_i32 = arith.constant 0 : i32
    %c0_i32_0 = arith.constant 0 : i32
    return %arg0, %c0_i32, %arg1 : i32, i32, i32
  }
  func.func @transform_5(%arg0: i32, %arg1: i32) -> (i32, i32, i32, i32) {
    %c0_i32 = arith.constant 0 : i32
    %c0_i32_0 = arith.constant 0 : i32
    %c0_i32_1 = arith.constant 0 : i32
    return %arg0, %arg1, %c0_i32, %c0_i32_0 : i32, i32, i32, i32
  }
}

</mosaic_0001>

<llo_original>
// kernel: tpu_custom_call.1
$region0: #{tpu_custom_call.1}
  #allocation0 [shape = 'u32[]', space=smem, size = 0x4, offset = 0x4, fixed_abs, tag = 'smem constant byte address 0x4 - core index']
  #allocation1 [shape = 'u32[144,128]{1,0:T(1,128)}', space=vmem, size = 0x12000, scoped, tag = 'internal scratch']
  %s0 = inlined_call_operand.hbm [shape: f32[8,8,256], index: 0, kind: input, shape index: {}]
  %s1 = inlined_call_operand.vmem [shape: f32[8,1], index: 1, kind: input, shape index: {}]
  %s2 = inlined_call_operand.vmem [shape: f32[8,1], index: 2, kind: input, shape index: {}]
  %s3 = inlined_call_operand.vmem [shape: f32[32,8], index: 3, kind: input, shape index: {}]
  %s4 = inlined_call_operand.hbm [shape: f32[8,32,256], index: 4, kind: output, shape index: {0}]
  %s5 = inlined_call_operand.vmem [shape: f32[8,1,32,2], index: 5, kind: output, shape index: {1}]
  %6 = xla_tuple %s4, %s5
  %s7 = sld [smem:[#allocation0]]
  $region61: #{tpu_custom_call.1} parent=0
    _
  %s9 = ssub.s32 1, %s7
  %s10 = scalar_select 0, %s9, %s7
  $region1: #{tpu_custom_call.1} parent=0
    #allocation2 [shape = 'u8[16384]{0}', space=vmem, size = 0x4000, scoped, tag = 'input window, operand 0']
    #allocation3 [shape = 's32[2]{0}', space=sflag, size = 0x8, scoped, tag = 'scoped memory for tpu_custom_call.1']
    #allocation4 [shape = 's32[2]{0}', space=sflag, size = 0x8, scoped, tag = 'scoped memory for tpu_custom_call.1']
    #allocation5 [shape = 'u8[65536]{0}', space=vmem, size = 0x10000, scoped, tag = 'output window, operand 0']
    %11 = vsyncpa [#allocation3], 0
    %s12 = scalar_lea.sflag [#allocation3], 1
    %13 = vsyncpa %s12, 0
    %14 = vsyncpa [#allocation4], 0
    %s15 = scalar_lea.sflag [#allocation4], 1
    %16 = vsyncpa %s15, 0
    loop: start=0, step=1, limit=10
    $region2: #{tpu_custom_call.1} parent=1 // loop_pre_header
      _
    $region3: #{tpu_custom_call.1} parent=1 // loop_header
      %s18 = sphi 0, %s22
      %p19 = scmp.ge.s32.totalorder %s18, 10
      %s25 = sphi 0, %s37
      %s26 = sphi 0, %s33
      %s27 = sphi 0, %s25
      %s28 = sphi 0, %s26
      %s29 = sphi 0, %s27
      %s30 = sphi 0, %s28
      %s42 = sphi 0, %s44
      %s45 = sphi 0, %s42
      %s46 = sphi 0, %s45
      %s62 = sphi 0, %s46
      %s66 = sphi 0, %s66
      %s68 = sphi 0, %s66
      %s69 = sphi 0, %s68
      %s83 = sphi 0, %s69
      %s87 = sphi 0, %s87
      %s89 = sphi 0, %s87
      %s90 = sphi 0, %s89
      %s104 = sphi 0, %s90
      %s108 = sphi 0, %s108
      %s110 = sphi 0, %s108
      %s111 = sphi 0, %s110
      %s125 = sphi 0, %s111
      %s133 = sphi 0, %s135
      %s136 = sphi 0, %s133
      %s137 = sphi 0, %s136
      %s153 = sphi 0, %s137
      %s161 = sphi 0, %s163
      %s164 = sphi 0, %s161
      %s165 = sphi 0, %s164
      %s181 = sphi 0, %s165
    $region4: #{tpu_custom_call.1} parent=1 // loop_header_branch
      %21 = sbr.rel (%p19) target = $region8
    $region5: #{tpu_custom_call.1} parent=1 // loop_body
      %s23 = ssub.s32 %s18, 1
      %s24 = ssub.s32 %s18, 2
      %s31 = sadd.s32 1, %s26
      %p32 = scmp.ge.s32.totalorder %s31, 1
      %s33 = scalar_select %p32, 0, %s31
      %s34 = sadd.s32 1, %s25
      %s35 = scalar_select %p32, %s34, %s25
      %p36 = scmp.ge.s32.totalorder %s35, 8
      %s37 = scalar_select %p36, 0, %s35
      %s38 = ssub.s32 %s25, %s37
      %s39 = ssub.s32 %s26, %s33
      %s40 = sor.u32 %s38, %s39
      %p41 = scmp.eq.s32.totalorder %s40, 0
      %s43 = sadd.s32 %s42, 1
      %s44 = scalar_select %p41, %s42, %s43
      %p47 = pneg %p41
      %p48 = scmp.eq.s32.totalorder %s18, 7
      %p49 = por %p47, %p48
      %p50 = scmp.ne.s32.totalorder %s42, %s45
      %p51 = scmp.eq.s32.totalorder %s18, 0
      %p52 = por %p50, %p51
      %p53 = scmp.ne.s32.totalorder %s42, %s45
      %p54 = scmp.eq.s32.totalorder %s23, 7
      %p55 = por %p53, %p54
      %p56 = scmp.ne.s32.totalorder %s45, %s46
      %p57 = scmp.eq.s32.totalorder %s23, 0
      %p58 = por %p56, %p57
      %p59 = scmp.ne.s32.totalorder %s45, %s46
      %p60 = scmp.eq.s32.totalorder %s24, 7
      %p61 = por %p59, %p60
      %p63 = scmp.ne.s32.totalorder %s46, %s62
      %p64 = scmp.eq.s32.totalorder %s24, 0
      %p65 = por %p63, %p64
      %s67 = sadd.s32 %s66, 1
      %p70 = scmp.eq.s32.totalorder %s18, 7
      %p71 = scmp.ne.s32.totalorder %s66, %s68
      %p72 = scmp.eq.s32.totalorder %s18, 0
      %p73 = por %p71, %p72
      %p74 = scmp.ne.s32.totalorder %s66, %s68
      %p75 = scmp.eq.s32.totalorder %s23, 7
      %p76 = por %p74, %p75
      %p77 = scmp.ne.s32.totalorder %s68, %s69
      %p78 = scmp.eq.s32.totalorder %s23, 0
      %p79 = por %p77, %p78
      %p80 = scmp.ne.s32.totalorder %s68, %s69
      %p81 = scmp.eq.s32.totalorder %s24, 7
      %p82 = por %p80, %p81
      %p84 = scmp.ne.s32.totalorder %s69, %s83
      %p85 = scmp.eq.s32.totalorder %s24, 0
      %p86 = por %p84, %p85
      %s88 = sadd.s32 %s87, 1
      %p91 = scmp.eq.s32.totalorder %s18, 7
      %p92 = scmp.ne.s32.totalorder %s87, %s89
      %p93 = scmp.eq.s32.totalorder %s18, 0
      %p94 = por %p92, %p93
      %p95 = scmp.ne.s32.totalorder %s87, %s89
      %p96 = scmp.eq.s32.totalorder %s23, 7
      %p97 = por %p95, %p96
      %p98 = scmp.ne.s32.totalorder %s89, %s90
      %p99 = scmp.eq.s32.totalorder %s23, 0
      %p100 = por %p98, %p99
      %p101 = scmp.ne.s32.totalorder %s89, %s90
      %p102 = scmp.eq.s32.totalorder %s24, 7
      %p103 = por %p101, %p102
      %p105 = scmp.ne.s32.totalorder %s90, %s104
      %p106 = scmp.eq.s32.totalorder %s24, 0
      %p107 = por %p105, %p106
      %s109 = sadd.s32 %s108, 1
      %p112 = scmp.eq.s32.totalorder %s18, 7
      %p113 = scmp.ne.s32.totalorder %s108, %s110
      %p114 = scmp.eq.s32.totalorder %s18, 0
      %p115 = por %p113, %p114
      %p116 = scmp.ne.s32.totalorder %s108, %s110
      %p117 = scmp.eq.s32.totalorder %s23, 7
      %p118 = por %p116, %p117
      %p119 = scmp.ne.s32.totalorder %s110, %s111
      %p120 = scmp.eq.s32.totalorder %s23, 0
      %p121 = por %p119, %p120
      %p122 = scmp.ne.s32.totalorder %s110, %s111
      %p123 = scmp.eq.s32.totalorder %s24, 7
      %p124 = por %p122, %p123
      %p126 = scmp.ne.s32.totalorder %s111, %s125
      %p127 = scmp.eq.s32.totalorder %s24, 0
      %p128 = por %p126, %p127
      %s129 = ssub.s32 %s25, %s37
      %s130 = ssub.s32 %s26, %s33
      %s131 = sor.u32 %s129, %s130
      %p132 = scmp.eq.s32.totalorder %s131, 0
      %s134 = sadd.s32 %s133, 1
      %s135 = scalar_select %p132, %s133, %s134
      %p138 = pneg %p132
      %p139 = scmp.eq.s32.totalorder %s18, 7
      %p140 = por %p138, %p139
      %p141 = scmp.ne.s32.totalorder %s133, %s136
      %p142 = scmp.eq.s32.totalorder %s18, 0
      %p143 = por %p141, %p142
      %p144 = scmp.ne.s32.totalorder %s133, %s136
      %p145 = scmp.eq.s32.totalorder %s23, 7
      %p146 = por %p144, %p145
      %p147 = scmp.ne.s32.totalorder %s136, %s137
      %p148 = scmp.eq.s32.totalorder %s23, 0
      %p149 = por %p147, %p148
      %p150 = scmp.ne.s32.totalorder %s136, %s137
      %p151 = scmp.eq.s32.totalorder %s24, 7
      %p152 = por %p150, %p151
      %p154 = scmp.ne.s32.totalorder %s137, %s153
      %p155 = scmp.eq.s32.totalorder %s24, 0
      %p156 = por %p154, %p155
      %s157 = ssub.s32 %s25, %s37
      %s158 = ssub.s32 %s26, %s33
      %s159 = sor.u32 %s157, %s158
      %p160 = scmp.eq.s32.totalorder %s159, 0
      %s162 = sadd.s32 %s161, 1
      %s163 = scalar_select %p160, %s161, %s162
      %p166 = pneg %p160
      %p167 = scmp.eq.s32.totalorder %s18, 7
      %p168 = por %p166, %p167
      %p169 = scmp.ne.s32.totalorder %s161, %s164
      %p170 = scmp.eq.s32.totalorder %s18, 0
      %p171 = por %p169, %p170
      %p172 = scmp.ne.s32.totalorder %s161, %s164
      %p173 = scmp.eq.s32.totalorder %s23, 7
      %p174 = por %p172, %p173
      %p175 = scmp.ne.s32.totalorder %s164, %s165
      %p176 = scmp.eq.s32.totalorder %s23, 0
      %p177 = por %p175, %p176
      %p178 = scmp.ne.s32.totalorder %s164, %s165
      %p179 = scmp.eq.s32.totalorder %s24, 7
      %p180 = por %p178, %p179
      %p182 = scmp.ne.s32.totalorder %s165, %s181
      %p183 = scmp.eq.s32.totalorder %s24, 0
      %p184 = por %p182, %p183
      %p185 = scmp.le.s32.totalorder 1, %s18
      %p186 = scmp.lt.s32.totalorder %s18, 9
      %p187 = pnand %p185, %p186
      %p188 = pneg %p187
      // Predicated region
      $region9: #{tpu_custom_call.1} parent=5 // pred_check
        _
      $region10: #{tpu_custom_call.1} parent=5 // pred_check_branch
        %190 = sbr.rel (%p187) target = $region12
      $region11: #{tpu_custom_call.1} parent=5 // pred_region
        %s191 = ssub.s32 %s18, 1
        // Predicated region
        $region13: #{tpu_custom_call.1} parent=11 // pred_check
          %p192 = pneg %p79
        $region14: #{tpu_custom_call.1} parent=11 // pred_check_branch
          %194 = sbr.rel (%p192) target = $region16
        $region15: #{tpu_custom_call.1} parent=11 // pred_region
          _
        $region16: #{tpu_custom_call.1} parent=11 // pred_fallthru
          _
        // Predicated region
        $region17: #{tpu_custom_call.1} parent=11 // pred_check
          %p195 = pneg %p100
        $region18: #{tpu_custom_call.1} parent=11 // pred_check_branch
          %197 = sbr.rel (%p195) target = $region20
        $region19: #{tpu_custom_call.1} parent=11 // pred_region
          _
        $region20: #{tpu_custom_call.1} parent=11 // pred_fallthru
          _
        // Predicated region
        $region21: #{tpu_custom_call.1} parent=11 // pred_check
          %p198 = pneg %p121
        $region22: #{tpu_custom_call.1} parent=11 // pred_check_branch
          %200 = sbr.rel (%p198) target = $region24
        $region23: #{tpu_custom_call.1} parent=11 // pred_region
          _
        $region24: #{tpu_custom_call.1} parent=11 // pred_fallthru
          _
      $region12: #{tpu_custom_call.1} parent=5 // pred_fallthru
        _
      %p201 = scmp.lt.s32.totalorder %s18, 8
      // Predicated region
      $region25: #{tpu_custom_call.1} parent=5 // pred_check
        %p202 = pneg %p201
      $region26: #{tpu_custom_call.1} parent=5 // pred_check_branch
        %204 = sbr.rel (%p202) target = $region28
      $region27: #{tpu_custom_call.1} parent=5 // pred_region
        // Predicated region
        $region29: #{tpu_custom_call.1} parent=27 // pred_check
          %p205 = pneg %p52
        $region30: #{tpu_custom_call.1} parent=27 // pred_check_branch
          %207 = sbr.rel (%p205) target = $region32
        $region31: #{tpu_custom_call.1} parent=27 // pred_region
          %s208 = sand.u32 %s42, 1
          %s209 = scalar_lea.sflag [#allocation3], %s208
          %s210 = sand.u32 %s42, 1
          %s211 = smul.addr %s210, 16
          %s212 = scalar_lea.vmem [#allocation2], %s211
          %s213 = smul.u32 2, %s26
          %s215 = ssub.s32 256, 256
          %216 = vsyncadd %s209, %s215
          %s217 = smul.addr %s25, 2
          %s218 = sadd.s32 %s213, %s217
          %s219 = smul.addr %s218, 128
          %s220 = scalar_lea.hbm %s0, %s219
          %s222 = sshll.u32 %s212, 4
          %s223 = int_to_ptr.vmem [resolvable:$true] %s222
          %225 = dma.hbm_to_vmem [thread:$0]  %s220, 256, %s223, %s209
        $region32: #{tpu_custom_call.1} parent=27 // pred_fallthru
          _
      $region28: #{tpu_custom_call.1} parent=5 // pred_fallthru
        _
      %p226 = scmp.le.s32.totalorder 1, %s18
      %p227 = scmp.lt.s32.totalorder %s18, 9
      %p228 = pnand %p226, %p227
      %p229 = pneg %p228
      // Predicated region
      $region33: #{tpu_custom_call.1} parent=5 // pred_check
        _
      $region34: #{tpu_custom_call.1} parent=5 // pred_check_branch
        %231 = sbr.rel (%p228) target = $region36
      $region35: #{tpu_custom_call.1} parent=5 // pred_region
        %s232 = ssub.s32 %s18, 1
        %s233 = sand.u32 %s45, 1
        %s234 = scalar_lea.sflag [#allocation3], %s233
        %s235 = sand.u32 %s45, 1
        %s236 = smul.addr %s235, 16
        %s237 = scalar_lea.vmem [#allocation2], %s236
        // Predicated region
        $region37: #{tpu_custom_call.1} parent=35 // pred_check
          %p238 = pneg %p58
        $region38: #{tpu_custom_call.1} parent=35 // pred_check_branch
          %240 = sbr.rel (%p238) target = $region40
        $region39: #{tpu_custom_call.1} parent=35 // pred_region
          %241 = dma.done %s234, 256
        $region40: #{tpu_custom_call.1} parent=35 // pred_fallthru
          _
        %s242 = sand.u32 %s45, 1
        %s243 = scalar_lea.sflag [#allocation3], %s242
        %s244 = sand.u32 %s45, 1
        %s245 = smul.addr %s244, 16
        %s246 = scalar_lea.vmem [#allocation2], %s245
        %p247 = pneg %p58
        %p248 = pneg %p55
        %p249 = pneg %p79
        %p250 = pneg %p76
        %p251 = pneg %p100
        %p252 = pneg %p97
        %p253 = pneg %p121
        %p254 = pneg %p118
        %p255 = pneg %p149
        %p256 = pneg %p146
        %s257 = sand.u32 %s136, 1
        %s258 = scalar_lea.sflag [#allocation4], %s257
        %s259 = sand.u32 %s136, 1
        %s260 = smul.addr %s259, 64
        %s261 = scalar_lea.vmem [#allocation5], %s260
        %p262 = pneg %p177
        %p263 = pneg %p174
        %p264 = scmp.lt.s32.totalorder %s27, 7
        %s265 = scalar_select %p264, %s27, 7
        %p266 = scmp.lt.s32.totalorder %s28, 0
        %s267 = scalar_select %p266, %s28, 0
        %s268 = smul.addr %s267, 4
        %s269 = smul.addr %s265, 4
        %s270 = sadd.s32 %s268, %s269
        %s271 = smul.addr %s270, 8
        %s272 = scalar_lea.vmem %s5, %s271
        %s273 = smul.u32 2, %s28
        %s274 = smul.u32 2, %s28
        %p275 = scmp.lt.s32.totalorder %s27, 7
        %s276 = scalar_select %p275, %s27, 7
        %p277 = scmp.lt.s32.totalorder %s28, 0
        %s278 = scalar_select %p277, %s28, 0
        %s279 = smul.addr %s278, 4
        %s280 = smul.addr %s276, 4
        %s281 = sadd.s32 %s279, %s280
        %s282 = smul.addr %s281, 8
        %s283 = scalar_lea.vmem %s5, %s282
        %v284 = vld [vmem:[%s237] sm:$0xff]
        %v285 = vld [vmem:[%s237 + $0x8] sm:$0xff]
        %v286 = vld [vmem:[%s1] sm:$0xff]
        %288 = vset.pattern.permute.xlu0 0
        %289 = vperm.xlu0 %288, %v286
        %v290 = vpop.permute.xlu0 %289
        %v292 = vmul.f32 %v284, %v290
        %v293 = vmul.f32 %v285, %v290
        %v294 = vld [vmem:[%s2] sm:$0xff]
        %296 = vset.pattern.permute.xlu0 0
        %297 = vperm.xlu0 %296, %v294
        %v298 = vpop.permute.xlu0 %297
        %v300 = vadd.f32 %v292, %v298
        %v301 = vadd.f32 %v293, %v298
        %v302 = vmax.f32 %v300, 0.0
        %v303 = vmax.f32 %v301, 0.0
        %v304 = vld [vmem:[%s3] sm:$0xff]
        %v305 = vld [vmem:[%s3 + $0x8] sm:$0xff]
        %v306 = vld [vmem:[%s3 + $0x10] sm:$0xff]
        %v307 = vld [vmem:[%s3 + $0x18] sm:$0xff]
        %vm308 = vcmask 64512
        %v310 = vsel %vm308, %v304, 0
        %v313 = vsel %vm308, %v305, 0
        %v316 = vsel %vm308, %v306, 0
        %v319 = vsel %vm308, %v307, 0
        %321 = vmatprep.subr.mxu0 %v303
        %322 = vmatpush1.msra.mxu0 %v302
        %323 = vmatprep.subr.mxu0 0.0
        %324 = vmatpush1.msra.mxu0 0.0
        %325 = vmatprep.subr.mxu0 0.0
        %326 = vmatpush1.msra.mxu0 0.0
        %327 = vmatprep.subr.mxu0 0.0
        %328 = vmatpush1.msra.mxu0 0.0
        %329 = vmatprep.subr.mxu0 0.0
        %330 = vmatpush1.msra.mxu0 0.0
        %331 = vmatprep.subr.mxu0 0.0
        %332 = vmatpush1.msra.mxu0 0.0
        %333 = vmatprep.subr.mxu0 0.0
        %334 = vmatpush1.msra.mxu0 0.0
        %335 = vmatprep.subr.mxu0 0.0
        %336 = vmatpush1.msra.mxu0 0.0
        %337 = vmatprep.subr.mxu0 0.0
        %338 = vmatpush1.msra.mxu0 0.0
        %339 = vmatprep.subr.mxu0 0.0
        %340 = vmatpush1.msra.mxu0 0.0
        %341 = vmatprep.subr.mxu0 0.0
        %342 = vmatpush1.msra.mxu0 0.0
        %343 = vmatprep.subr.mxu0 0.0
        %344 = vmatpush1.msra.mxu0 0.0
        %345 = vmatprep.subr.mxu0 0.0
        %346 = vmatpush1.msra.mxu0 0.0
        %347 = vmatprep.subr.mxu0 0.0
        %348 = vmatpush1.msra.mxu0 0.0
        %349 = vmatprep.subr.mxu0 0.0
        %350 = vmatpush1.msra.mxu0 0.0
        %351 = vmatprep.subr.mxu0 0.0
        %352 = vmatpush1.msra.mxu0 0.0
        %353 = vmatprep.subr.mxu0 0.0
        %354 = vmatpush1.msra.mxu0 0.0
        %355 = vmatprep.subr.mxu0 0.0
        %356 = vmatpush1.msra.mxu0 0.0
        %357 = vmatprep.subr.mxu0 0.0
        %358 = vmatpush1.msra.mxu0 0.0
        %359 = vmatprep.subr.mxu0 0.0
        %360 = vmatpush1.msra.mxu0 0.0
        %361 = vmatprep.subr.mxu0 0.0
        %362 = vmatpush1.msra.mxu0 0.0
        %363 = vmatprep.subr.mxu0 0.0
        %364 = vmatpush1.msra.mxu0 0.0
        %365 = vmatprep.subr.mxu0 0.0
        %366 = vmatpush1.msra.mxu0 0.0
        %367 = vmatprep.subr.mxu0 0.0
        %368 = vmatpush1.msra.mxu0 0.0
        %369 = vmatprep.subr.mxu0 0.0
        %370 = vmatpush1.msra.mxu0 0.0
        %371 = vmatprep.subr.mxu0 0.0
        %372 = vmatpush1.msra.mxu0 0.0
        %373 = vmatprep.subr.mxu0 0.0
        %374 = vmatpush1.msra.mxu0 0.0
        %375 = vmatprep.subr.mxu0 0.0
        %376 = vmatpush1.msra.mxu0 0.0
        %377 = vmatprep.subr.mxu0 0.0
        %378 = vmatpush1.msra.mxu0 0.0
        %379 = vmatprep.subr.mxu0 0.0
        %380 = vmatpush1.msra.mxu0 0.0
        %381 = vmatprep.subr.mxu0 0.0
        %382 = vmatpush1.msra.mxu0 0.0
        %383 = vmatprep.subr.mxu0 0.0
        %384 = vmatpush1.msra.mxu0 0.0
        %385 = vmatprep.mubr.f32.mxu0 0.0
        %386 = vmatmul.mubr.f32.gmra.mrb[0].mxu0 %v310
        %v387 = vpop.f32.mrb[0].mxu0
        %v388 = vadd.f32 0.0, %v387
        %v389 = vpop.f32.mrb[0].mxu0
        %v390 = vadd.f32 0.0, %v389
        %391 = vmatprep.mubr.f32.mxu0 0.0
        %392 = vmatmul.mubr.f32.gmra.mrb[0].mxu0 %v313
        %v393 = vpop.f32.mrb[0].mxu0
        %v394 = vadd.f32 0.0, %v393
        %v395 = vpop.f32.mrb[0].mxu0
        %v396 = vadd.f32 0.0, %v395
        %397 = vmatprep.mubr.f32.mxu0 0.0
        %398 = vmatmul.mubr.f32.gmra.mrb[0].mxu0 %v316
        %v399 = vpop.f32.mrb[0].mxu0
        %v400 = vadd.f32 0.0, %v399
        %v401 = vpop.f32.mrb[0].mxu0
        %v402 = vadd.f32 0.0, %v401
        %403 = vmatprep.mubr.f32.mxu0 0.0
        %404 = vmatmul.mubr.f32.gmra.mrb[0].mxu0 %v319
        %v405 = vpop.f32.mrb[0].mxu0
        %v406 = vadd.f32 0.0, %v405
        %v407 = vpop.f32.mrb[0].mxu0
        %v408 = vadd.f32 0.0, %v407
        %409 = vdwg.mxu0
        %410 = vst [vmem:[%s261] sm:$0xff] %v388
        %411 = vst [vmem:[%s261 + $0x8] sm:$0xff] %v390
        %412 = vst [vmem:[%s261 + $0x10] sm:$0xff] %v394
        %413 = vst [vmem:[%s261 + $0x18] sm:$0xff] %v396
        %414 = vst [vmem:[%s261 + $0x20] sm:$0xff] %v400
        %415 = vst [vmem:[%s261 + $0x28] sm:$0xff] %v402
        %416 = vst [vmem:[%s261 + $0x30] sm:$0xff] %v406
        %417 = vst [vmem:[%s261 + $0x38] sm:$0xff] %v408
        %v418 = vadd.f32 %v388, %v390
        %419 = vadd.xlane.f32.xlu0 %v418
        %v420 = vpop.xlane.xlu0 %419
        %v421 = vadd.f32 %v394, %v396
        %422 = vadd.xlane.f32.xlu0 %v421
        %v423 = vpop.xlane.xlu0 %422
        %v424 = vadd.f32 %v400, %v402
        %425 = vadd.xlane.f32.xlu0 %v424
        %v426 = vpop.xlane.xlu0 %425
        %v427 = vadd.f32 %v406, %v408
        %428 = vadd.xlane.f32.xlu0 %v427
        %v429 = vpop.xlane.xlu0 %428
        %vm430 = vcmask 7168
        %431 = vst.msk [vmem:[%s283] sm:$0xff] %vm430, %v420
        %432 = vst.msk [vmem:[%s283 + $0x8] sm:$0xff] %vm430, %v423
        %433 = vst.msk [vmem:[%s283 + $0x10] sm:$0xff] %vm430, %v426
        %434 = vst.msk [vmem:[%s283 + $0x18] sm:$0xff] %vm430, %v429
        %v435 = vmul.f32 %v388, %v388
        %v436 = vmul.f32 %v390, %v390
        %v437 = vmul.f32 %v394, %v394
        %v438 = vmul.f32 %v396, %v396
        %v439 = vmul.f32 %v400, %v400
        %v440 = vmul.f32 %v402, %v402
        %v441 = vmul.f32 %v406, %v406
        %v442 = vmul.f32 %v408, %v408
        %v443 = vadd.f32 %v435, %v436
        %444 = vadd.xlane.f32.xlu0 %v443
        %v445 = vpop.xlane.xlu0 %444
        %v446 = vadd.f32 %v437, %v438
        %447 = vadd.xlane.f32.xlu0 %v446
        %v448 = vpop.xlane.xlu0 %447
        %v449 = vadd.f32 %v439, %v440
        %450 = vadd.xlane.f32.xlu0 %v449
        %v451 = vpop.xlane.xlu0 %450
        %v452 = vadd.f32 %v441, %v442
        %453 = vadd.xlane.f32.xlu0 %v452
        %v454 = vpop.xlane.xlu0 %453
        %vm455 = vcmask 15368
        %456 = vst.msk [vmem:[%s283] sm:$0xff] %vm455, %v445
        %457 = vst.msk [vmem:[%s283 + $0x8] sm:$0xff] %vm455, %v448
        %458 = vst.msk [vmem:[%s283 + $0x10] sm:$0xff] %vm455, %v451
        %459 = vst.msk [vmem:[%s283 + $0x18] sm:$0xff] %vm455, %v454
        %s460 = sand.u32 %s136, 1
        %s461 = scalar_lea.sflag [#allocation4], %s460
        %s462 = sand.u32 %s136, 1
        %s463 = smul.addr %s462, 64
        %s464 = scalar_lea.vmem [#allocation5], %s463
        %p465 = scmp.lt.s32.totalorder %s27, 7
        %s466 = scalar_select %p465, %s27, 7
        %p467 = scmp.lt.s32.totalorder %s28, 0
        %s468 = scalar_select %p467, %s28, 0
        %s469 = smul.addr %s468, 4
        %s470 = smul.addr %s466, 4
        %s471 = sadd.s32 %s469, %s470
        %s472 = smul.addr %s471, 8
        %s473 = scalar_lea.vmem %s5, %s472
        // Predicated region
        $region41: #{tpu_custom_call.1} parent=35 // pred_check
          %p474 = pneg %p146
        $region42: #{tpu_custom_call.1} parent=35 // pred_check_branch
          %476 = sbr.rel (%p474) target = $region44
        $region43: #{tpu_custom_call.1} parent=35 // pred_region
          %s477 = smul.u32 2, %s28
          %s479 = ssub.s32 1024, 1024
          %480 = vsyncadd %s461, %s479
          %s481 = smul.addr %s27, 8
          %s482 = sadd.s32 %s477, %s481
          %s483 = smul.addr %s482, 128
          %s484 = scalar_lea.hbm %s4, %s483
          %s485 = sshll.u32 %s464, 4
          %s486 = int_to_ptr.vmem [resolvable:$true] %s485
          %491 = dma.vmem_to_hbm [thread:$0]  %s486, 1024, %s484, %s461, 256, 256, 16
        $region44: #{tpu_custom_call.1} parent=35 // pred_fallthru
          _
        // Predicated region
        $region45: #{tpu_custom_call.1} parent=35 // pred_check
          %p492 = pneg %p174
        $region46: #{tpu_custom_call.1} parent=35 // pred_check_branch
          %494 = sbr.rel (%p492) target = $region48
        $region47: #{tpu_custom_call.1} parent=35 // pred_region
          _
        $region48: #{tpu_custom_call.1} parent=35 // pred_fallthru
          _
      $region36: #{tpu_custom_call.1} parent=5 // pred_fallthru
        _
      %p495 = scmp.le.s32.totalorder 2, %s18
      // Predicated region
      $region49: #{tpu_custom_call.1} parent=5 // pred_check
        %p496 = pneg %p495
      $region50: #{tpu_custom_call.1} parent=5 // pred_check_branch
        %498 = sbr.rel (%p496) target = $region52
      $region51: #{tpu_custom_call.1} parent=5 // pred_region
        %s499 = ssub.s32 %s18, 2
        // Predicated region
        $region53: #{tpu_custom_call.1} parent=51 // pred_check
          %p500 = pneg %p152
        $region54: #{tpu_custom_call.1} parent=51 // pred_check_branch
          %502 = sbr.rel (%p500) target = $region56
        $region55: #{tpu_custom_call.1} parent=51 // pred_region
          %s503 = sand.u32 %s137, 1
          %s504 = scalar_lea.sflag [#allocation4], %s503
          %s505 = sand.u32 %s137, 1
          %s506 = smul.addr %s505, 64
          %s507 = scalar_lea.vmem [#allocation5], %s506
          %508 = dma.done %s504, 1024
        $region56: #{tpu_custom_call.1} parent=51 // pred_fallthru
          _
        // Predicated region
        $region57: #{tpu_custom_call.1} parent=51 // pred_check
          %p509 = pneg %p180
        $region58: #{tpu_custom_call.1} parent=51 // pred_check_branch
          %511 = sbr.rel (%p509) target = $region60
        $region59: #{tpu_custom_call.1} parent=51 // pred_region
          %p512 = scmp.lt.s32.totalorder %s29, 7
          %s513 = scalar_select %p512, %s29, 7
          %p514 = scmp.lt.s32.totalorder %s30, 0
          %s515 = scalar_select %p514, %s30, 0
          %s516 = smul.addr %s515, 4
          %s517 = smul.addr %s513, 4
          %s518 = sadd.s32 %s516, %s517
          %s519 = smul.addr %s518, 8
          %s520 = scalar_lea.vmem %s5, %s519
        $region60: #{tpu_custom_call.1} parent=51 // pred_fallthru
          _
      $region52: #{tpu_custom_call.1} parent=5 // pred_fallthru
        _
    $region6: #{tpu_custom_call.1} parent=1 // loop_footer
      %s22 = sadd.s32 1, %s18
    $region7: #{tpu_custom_call.1} parent=1 // loop_footer_branch
      %17 = sbr.rel target = $region3
    $region8: #{tpu_custom_call.1} parent=1 // loop_exit
      _
    %521 = vsyncpa [#allocation3], 1
    %s522 = scalar_lea.sflag [#allocation3], 1
    %523 = vsyncpa %s522, 1
    %524 = vsyncpa [#allocation4], 1
    %s525 = scalar_lea.sflag [#allocation4], 1
    %526 = vsyncpa %s525, 1

</llo_original>
